<compile_context>
chip_gen: v7x
topology: tpu7x:2x2x1
jax: 0.10.0
libtpu: 0.0.40
codegen_flags: <defaults>
</compile_context>

<pallas_src>
import functools

import jax
import jax.numpy as jnp
from jax.experimental import pallas as pl
from jax.experimental.pallas import tpu as pltpu


# Output-block byte budget per buffer (double-buffered by the Pallas pipeline).
OUT_BLOCK_BYTES_TARGET = 8 * 1024 * 1024
GEO_TILE_CAP = 32768      # 32-ch f32 output  -> 4 MiB block  (review: 16384-32768)
DEPTH_TILE_CAP = 4096     # 1024-ch output    -> 8 MiB block  (2048 f32 / 4096 bf16)
VMEM_LIMIT_BYTES = 32 * 1024 * 1024   # explicit: raises v5e's 16 MiB scoped default,
                                      # leaves headroom inside v7x's 64 MiB physical VMEM.


# ---------------------------------------------------------------------------
# Pallas kernel
# ---------------------------------------------------------------------------

def _affine_1x1_kernel(x_ref, wt_ref, b_ref, o_ref):
    """Per-pixel affine map, NCHW layout.

    x_ref : (Cin,  tp)   pixel tile (channels on sublanes, pixels on lanes)
    wt_ref: (Cout, Cin)  precomposed weight, transposed
    b_ref : (Cout, 1)    precomposed bias
    o_ref : (Cout, tp)
    """
    x = x_ref[...].astype(jnp.float32)
    cin = x_ref.shape[0]
    # Unrolled VPU broadcast-FMAs (Cin is 1 or 3); kernel is HBM-write-bound so
    # this is free filler under the store/DMA bound.
    acc = b_ref[...] + wt_ref[:, 0:1] * x[0:1, :]
    for k in range(1, cin):
        acc = acc + wt_ref[:, k:k + 1] * x[k:k + 1, :]
    o_ref[...] = acc.astype(o_ref.dtype)   # bf16 store = pack-on-store, all gens


# ---------------------------------------------------------------------------
# Tiling helpers (all static / trace-time Python)
# ---------------------------------------------------------------------------

def _pixel_tile_target(cout, out_itemsize, cap):
    """Pixel tile such that the output block is ~OUT_BLOCK_BYTES_TARGET, capped."""
    t = OUT_BLOCK_BYTES_TARGET // (cout * out_itemsize)
    t = (t // 128) * 128
    return max(128, min(cap, t))


def _choose_pixel_tile(hw, target):
    """Return (tp, hw_pad).  Prefers a tile that exactly divides H*W so the output
    needs no pad+un-pad copy (the un-pad slice re-reads/re-writes the whole output)."""
    if hw <= target:
        return hw, hw                       # full-extent block: always legal
    if hw % 128 == 0:
        start = (target // 128) * 128
        for t in range(start, 127, -128):   # largest 128-multiple divisor <= target
            if hw % t == 0:
                return t, hw
    # TODO(synk): ragged H*W (not a multiple of 128, larger than one tile): fall back
    # to pad+slice; only hit for odd crop sizes.
    tp = (target // 128) * 128
    return tp, pl.cdiv(hw, tp) * tp


# ---------------------------------------------------------------------------
# Wrapper (layout plumbing + pallas_call)
# ---------------------------------------------------------------------------

def _affine_1x1_nchw(x_nchw, w_eff, b_eff, *, tile_cap, out_dtype=jnp.float32):
    """y[n, c, hw] = sum_k x[n, k, hw] * w_eff[k, c] + b_eff[0, c].  NCHW in / NCHW out."""
    N, Cin, H, W = x_nchw.shape
    Cout = w_eff.shape[1]
    HW = H * W
    x = x_nchw.reshape(N, Cin, HW)          # free row-major reshape

    target = _pixel_tile_target(Cout, jnp.dtype(out_dtype).itemsize, tile_cap)
    tp, HW_pad = _choose_pixel_tile(HW, target)
    if HW_pad != HW:
        x = jnp.pad(x, ((0, 0), (0, 0), (0, HW_pad - HW)))

    wt = jnp.transpose(w_eff)                # (Cout, Cin)  -- tiny
    bt = jnp.transpose(b_eff)                # (Cout, 1)

    # Grid: (batch, pixel-tiles).  Both axes "parallel" so v7x's 2 TensorCores share
    # the work; with the tile caps above, realistic crops keep the grid >= 4 steps.
    out = pl.pallas_call(
        _affine_1x1_kernel,
        out_shape=jax.ShapeDtypeStruct((N, Cout, HW_pad), out_dtype),
        grid_spec=pltpu.PrefetchScalarGridSpec(
            num_scalar_prefetch=0,
            grid=(N, HW_pad // tp),
            in_specs=[
                pl.BlockSpec((None, Cin, tp), lambda n, p: (n, 0, p)),
                pl.BlockSpec((Cout, Cin), lambda n, p: (0, 0)),   # constant -> fetched once
                pl.BlockSpec((Cout, 1), lambda n, p: (0, 0)),
            ],
            out_specs=pl.BlockSpec((None, Cout, tp), lambda n, p: (n, 0, p)),
        ),
        compiler_params=pltpu.CompilerParams(
            dimension_semantics=("parallel", "parallel"),
            vmem_limit_bytes=VMEM_LIMIT_BYTES,
        ),
    )(x, wt, bt)

    if HW_pad != HW:
        out = out[:, :, :HW]
    return out.reshape(N, Cout, H, W)


def _compose_affine(params):
    """Collapse [w1, b1, w2, b2, ...] (no activations) into one (W_eff, b_eff)."""
    w_eff, b_eff = params[0], params[1]
    for w, b in zip(params[2::2], params[3::2]):
        b_eff = b_eff @ w + b
        w_eff = w_eff @ w
    return w_eff, b_eff


# ---------------------------------------------------------------------------
# Parameters & public API (mirrors FeatureExtractor)
# ---------------------------------------------------------------------------

def init_params(key):
    """Deterministic init.  Weights stored as (C_in, C_out) for x @ W;
    PyTorch Conv2d weights (C_out, C_in, 1, 1) must be transposed on load."""
    def _layer(k, cin, cout):
        kw, kb = jax.random.split(k)
        w = jax.random.normal(kw, (cin, cout), jnp.float32) * 0.05
        b = jax.random.normal(kb, (1, cout), jnp.float32) * 0.05
        return w, b

    keys = jax.random.split(key, 6)
    pw1, pb1 = _layer(keys[0], 3, 16)       # pc_feat: Conv2d(3,16,1), Conv2d(16,32,1)
    pw2, pb2 = _layer(keys[1], 16, 32)
    dw1, db1 = _layer(keys[2], 1, 3)        # depth_feat: 1->3->64->128->1024
    dw2, db2 = _layer(keys[3], 3, 64)
    dw3, db3 = _layer(keys[4], 64, 128)
    dw4, db4 = _layer(keys[5], 128, 1024)
    return {
        "pc_feat": [pw1, pb1, pw2, pb2],
        "depth_feat": [dw1, db1, dw2, db2, dw3, db3, dw4, db4],
    }


def precompose_params(params):
    """Collapse each conv stack into a single (W_eff, b_eff) ONCE at load time
    (removes the per-call composition matmuls and their serial launch latency)."""
    return {
        "pc_feat": _compose_affine(params["pc_feat"]),
        "depth_feat": _compose_affine(params["depth_feat"]),
    }


@jax.jit
def geo_emb(composed, pc):
    """pc: (N, 3, H, W) -> (N, 32, H, W), f32 (matches PyTorch)."""
    w_eff, b_eff = composed["pc_feat"]
    return _affine_1x1_nchw(pc, w_eff, b_eff, tile_cap=GEO_TILE_CAP)


@functools.partial(jax.jit, static_argnames=("out_dtype",))
def depth_emb(composed, dep_img, out_dtype=jnp.bfloat16):
    """dep_img: (N, 1, H, W) -> (N, 1024, H, W).

    Default bf16 output halves the dominant HBM write traffic (the path is purely
    write-bound).  Pass out_dtype=jnp.float32 to bit-match the PyTorch module if the
    downstream consumer (PoseNetFeat) requires full precision.
    """
    w_eff, b_eff = composed["depth_feat"]
    return _affine_1x1_nchw(dep_img, w_eff, b_eff,
                            tile_cap=DEPTH_TILE_CAP, out_dtype=out_dtype)


@jax.jit
def feature_extractor_forward(composed, img, pc):
    """Mirrors FeatureExtractor.forward(img, pc) -> (color_emb, geo_emb).

    # TODO(synk): ModifiedResnet (self.cnn) is not defined in the provided module,
    # so the color embedding branch is passed through untouched.
    """
    color_emb = img
    return color_emb, geo_emb(composed, pc)


# ---------------------------------------------------------------------------
# Pure-JAX per-layer reference for verification
# ---------------------------------------------------------------------------

def _ref_stack(x_nchw, params, c_out):
    N, C, H, W = x_nchw.shape
    x = jnp.transpose(x_nchw, (0, 2, 3, 1)).reshape(-1, C)
    for w, b in zip(params[0::2], params[1::2]):
        x = x @ w + b
    return jnp.transpose(x.reshape(N, H, W, c_out), (0, 3, 1, 2))


if __name__ == "__main__":
    key = jax.random.PRNGKey(0)
    k_img, k_pc, k_dep, k_params = jax.random.split(key, 4)

    N, H, W = 2, 16, 16
    img = jax.random.normal(k_img, (N, 3, H, W), jnp.float32)
    pc = jax.random.normal(k_pc, (N, 3, H, W), jnp.float32)
    dep = jax.random.normal(k_dep, (N, 1, H, W), jnp.float32)

    params = init_params(k_params)
    composed = precompose_params(params)     # one-time host-side composition

    color_out, geo_out = jax.block_until_ready(
        feature_extractor_forward(composed, img, pc))
    depth_bf16 = jax.block_until_ready(depth_emb(composed, dep))                      # bf16 default
    depth_f32 = jax.block_until_ready(depth_emb(composed, dep, out_dtype=jnp.float32))

    # correctness checks against the per-layer pure-JAX reference
    geo_ref = _ref_stack(pc, params["pc_feat"], 32)
    dep_ref = _ref_stack(dep, params["depth_feat"], 1024)
    assert geo_out.shape == (N, 32, H, W)
    assert depth_bf16.shape == (N, 1024, H, W) and depth_bf16.dtype == jnp.bfloat16
    assert depth_f32.shape == (N, 1024, H, W)
    assert jnp.allclose(color_out, img)
    assert jnp.allclose(geo_out, geo_ref, atol=1e-4, rtol=1e-4)
    assert jnp.allclose(depth_f32, dep_ref, atol=1e-4, rtol=1e-4)
    assert jnp.allclose(depth_bf16.astype(jnp.float32), dep_ref, atol=5e-3, rtol=5e-2)

    print("KERNEL_OK")
</pallas_src>

<mosaic_0001>
module attributes {stable_mosaic.version = 11 : i64} {
  func.func @_affine_1x1_kernel(%arg0: i32, %arg1: i32, %arg2: memref<1x3x256xf32, #tpu.memory_space<vmem>>, %arg3: memref<32x3xf32, #tpu.memory_space<vmem>>, %arg4: memref<32x1xf32, #tpu.memory_space<vmem>>, %arg5: memref<1x32x256xf32, #tpu.memory_space<vmem>>) attributes {dimension_semantics = [#tpu.dimension_semantics<parallel>, #tpu.dimension_semantics<parallel>], iteration_bounds = array<i64: 2, 1>, scalar_prefetch = 0 : i64, scratch_operands = 0 : i64, tpu.core_type = #tpu.core_type<tc>, window_params = [{transform_indices = @transform_0, window_bounds = array<i64: 1, 3, 256>}, {pipeline_mode = #tpu.pipeline_mode<synchronous>, transform_indices = @transform_1, window_bounds = array<i64: 32, 3>}, {pipeline_mode = #tpu.pipeline_mode<synchronous>, transform_indices = @transform_2, window_bounds = array<i64: 32, 1>}, {transform_indices = @transform_3, window_bounds = array<i64: 1, 32, 256>}]} {
    %c0 = arith.constant 0 : index
    %c0_0 = arith.constant 0 : index
    %c0_1 = arith.constant 0 : index
    %0 = vector.load %arg2[%c0, %c0_0, %c0_1] : memref<1x3x256xf32, #tpu.memory_space<vmem>>, vector<1x3x256xf32>
    %1 = vector.shape_cast %0 : vector<1x3x256xf32> to vector<3x256xf32>
    %c0_2 = arith.constant 0 : index
    %c0_3 = arith.constant 0 : index
    %2 = vector.load %arg4[%c0_2, %c0_3] : memref<32x1xf32, #tpu.memory_space<vmem>>, vector<32x1xf32>
    %c0_4 = arith.constant 0 : index
    %c0_5 = arith.constant 0 : index
    %3 = vector.load %arg3[%c0_4, %c0_5] : memref<32x3xf32, #tpu.memory_space<vmem>>, vector<32x1xf32>
    %4 = vector.extract_strided_slice %1 {offsets = [0, 0], sizes = [1, 256], strides = [1, 1]} : vector<3x256xf32> to vector<1x256xf32>
    %5 = vector.broadcast %3 : vector<32x1xf32> to vector<32x256xf32>
    %6 = vector.broadcast %4 : vector<1x256xf32> to vector<32x256xf32>
    %7 = arith.mulf %5, %6 : vector<32x256xf32>
    %8 = vector.broadcast %2 : vector<32x1xf32> to vector<32x256xf32>
    %9 = arith.addf %8, %7 : vector<32x256xf32>
    %c0_6 = arith.constant 0 : index
    %c1 = arith.constant 1 : index
    %10 = vector.load %arg3[%c0_6, %c1] : memref<32x3xf32, #tpu.memory_space<vmem>>, vector<32x1xf32>
    %11 = vector.extract_strided_slice %1 {offsets = [1, 0], sizes = [1, 256], strides = [1, 1]} : vector<3x256xf32> to vector<1x256xf32>
    %12 = vector.broadcast %10 : vector<32x1xf32> to vector<32x256xf32>
    %13 = vector.broadcast %11 : vector<1x256xf32> to vector<32x256xf32>
    %14 = arith.mulf %12, %13 : vector<32x256xf32>
    %15 = arith.addf %9, %14 : vector<32x256xf32>
    %c0_7 = arith.constant 0 : index
    %c2 = arith.constant 2 : index
    %16 = vector.load %arg3[%c0_7, %c2] : memref<32x3xf32, #tpu.memory_space<vmem>>, vector<32x1xf32>
    %17 = vector.extract_strided_slice %1 {offsets = [2, 0], sizes = [1, 256], strides = [1, 1]} : vector<3x256xf32> to vector<1x256xf32>
    %18 = vector.broadcast %16 : vector<32x1xf32> to vector<32x256xf32>
    %19 = vector.broadcast %17 : vector<1x256xf32> to vector<32x256xf32>
    %20 = arith.mulf %18, %19 : vector<32x256xf32>
    %21 = arith.addf %15, %20 : vector<32x256xf32>
    %c0_8 = arith.constant 0 : index
    %c0_9 = arith.constant 0 : index
    %c0_10 = arith.constant 0 : index
    %22 = vector.load %arg5[%c0_8, %c0_9, %c0_10] : memref<1x32x256xf32, #tpu.memory_space<vmem>>, vector<1x32x256xf32>
    %23 = vector.shape_cast %22 : vector<1x32x256xf32> to vector<32x256xf32>
    %24 = vector.shape_cast %21 : vector<32x256xf32> to vector<1x32x256xf32>
    tpu.vector_store %arg5[%c0_8, %c0_9, %c0_10], %24 {strides = array<i32>} : memref<1x32x256xf32, #tpu.memory_space<vmem>>, vector<1x32x256xf32>,
    return
  }
  func.func @transform_0(%arg0: i32, %arg1: i32) -> (i32, i32, i32) {
    %c0_i32 = arith.constant 0 : i32
    %c0_i32_0 = arith.constant 0 : i32
    return %arg0, %c0_i32, %arg1 : i32, i32, i32
  }
  func.func @transform_1(%arg0: i32, %arg1: i32) -> (i32, i32) {
    %c0_i32 = arith.constant 0 : i32
    %c0_i32_0 = arith.constant 0 : i32
    %c0_i32_1 = arith.constant 0 : i32
    return %c0_i32, %c0_i32_0 : i32, i32
  }
  func.func @transform_2(%arg0: i32, %arg1: i32) -> (i32, i32) {
    %c0_i32 = arith.constant 0 : i32
    %c0_i32_0 = arith.constant 0 : i32
    %c0_i32_1 = arith.constant 0 : i32
    return %c0_i32, %c0_i32_0 : i32, i32
  }
  func.func @transform_3(%arg0: i32, %arg1: i32) -> (i32, i32, i32) {
    %c0_i32 = arith.constant 0 : i32
    %c0_i32_0 = arith.constant 0 : i32
    return %arg0, %c0_i32, %arg1 : i32, i32, i32
  }
}

</mosaic_0001>

<llo_original>
// kernel: geo_emb.1
$region0: #{geo_emb.1}
  #allocation0 [shape = 'u32[]', space=smem, size = 0x4, offset = 0x4, fixed_abs, tag = 'smem constant byte address 0x4 - core index']
  #allocation1 [shape = 'u32[144,128]{1,0:T(1,128)}', space=vmem, size = 0x12000, scoped, tag = 'internal scratch']
  %s0 = inlined_call_operand.vmem [shape: f32[2,3,256], index: 0, kind: input, shape index: {}]
  %s1 = inlined_call_operand.vmem [shape: f32[32,3], index: 1, kind: input, shape index: {}]
  %s2 = inlined_call_operand.vmem [shape: f32[32,1], index: 2, kind: input, shape index: {}]
  %s3 = inlined_call_operand.vmem [shape: f32[2,32,256], index: 3, kind: output, shape index: {}]
  %s4 = sld [smem:[#allocation0]]
  $region45: #{geo_emb.1} parent=0
    _
  %s6 = ssub.s32 1, %s4
  %s7 = scalar_select 0, %s6, %s4
  loop: start=0, step=1, limit=4
  $region2: #{geo_emb.1} parent=0 // loop_pre_header
    _
  $region3: #{geo_emb.1} parent=0 // loop_header
    %s9 = sphi 0, %s13
    %p10 = scmp.ge.s32.totalorder %s9, 4
    %s16 = sphi 0, %s28
    %s17 = sphi 0, %s24
    %s18 = sphi 0, %s16
    %s19 = sphi 0, %s17
    %s20 = sphi 0, %s18
    %s21 = sphi 0, %s19
    %s33 = sphi 0, %s35
    %s36 = sphi 0, %s33
    %s37 = sphi 0, %s36
    %s53 = sphi 0, %s37
    %s57 = sphi 0, %s57
    %s59 = sphi 0, %s57
    %s60 = sphi 0, %s59
    %s74 = sphi 0, %s60
    %s78 = sphi 0, %s78
    %s80 = sphi 0, %s78
    %s81 = sphi 0, %s80
    %s95 = sphi 0, %s81
    %s103 = sphi 0, %s105
    %s106 = sphi 0, %s103
    %s107 = sphi 0, %s106
    %s123 = sphi 0, %s107
  $region4: #{geo_emb.1} parent=0 // loop_header_branch
    %12 = sbr.rel (%p10) target = $region8
  $region5: #{geo_emb.1} parent=0 // loop_body
    %s14 = ssub.s32 %s9, 1
    %s15 = ssub.s32 %s9, 2
    %s22 = sadd.s32 1, %s17
    %p23 = scmp.ge.s32.totalorder %s22, 1
    %s24 = scalar_select %p23, 0, %s22
    %s25 = sadd.s32 1, %s16
    %s26 = scalar_select %p23, %s25, %s16
    %p27 = scmp.ge.s32.totalorder %s26, 2
    %s28 = scalar_select %p27, 0, %s26
    %s29 = ssub.s32 %s16, %s28
    %s30 = ssub.s32 %s17, %s24
    %s31 = sor.u32 %s29, %s30
    %p32 = scmp.eq.s32.totalorder %s31, 0
    %s34 = sadd.s32 %s33, 1
    %s35 = scalar_select %p32, %s33, %s34
    %p38 = pneg %p32
    %p39 = scmp.eq.s32.totalorder %s9, 1
    %p40 = por %p38, %p39
    %p41 = scmp.ne.s32.totalorder %s33, %s36
    %p42 = scmp.eq.s32.totalorder %s9, 0
    %p43 = por %p41, %p42
    %p44 = scmp.ne.s32.totalorder %s33, %s36
    %p45 = scmp.eq.s32.totalorder %s14, 1
    %p46 = por %p44, %p45
    %p47 = scmp.ne.s32.totalorder %s36, %s37
    %p48 = scmp.eq.s32.totalorder %s14, 0
    %p49 = por %p47, %p48
    %p50 = scmp.ne.s32.totalorder %s36, %s37
    %p51 = scmp.eq.s32.totalorder %s15, 1
    %p52 = por %p50, %p51
    %p54 = scmp.ne.s32.totalorder %s37, %s53
    %p55 = scmp.eq.s32.totalorder %s15, 0
    %p56 = por %p54, %p55
    %s58 = sadd.s32 %s57, 1
    %p61 = scmp.eq.s32.totalorder %s9, 1
    %p62 = scmp.ne.s32.totalorder %s57, %s59
    %p63 = scmp.eq.s32.totalorder %s9, 0
    %p64 = por %p62, %p63
    %p65 = scmp.ne.s32.totalorder %s57, %s59
    %p66 = scmp.eq.s32.totalorder %s14, 1
    %p67 = por %p65, %p66
    %p68 = scmp.ne.s32.totalorder %s59, %s60
    %p69 = scmp.eq.s32.totalorder %s14, 0
    %p70 = por %p68, %p69
    %p71 = scmp.ne.s32.totalorder %s59, %s60
    %p72 = scmp.eq.s32.totalorder %s15, 1
    %p73 = por %p71, %p72
    %p75 = scmp.ne.s32.totalorder %s60, %s74
    %p76 = scmp.eq.s32.totalorder %s15, 0
    %p77 = por %p75, %p76
    %s79 = sadd.s32 %s78, 1
    %p82 = scmp.eq.s32.totalorder %s9, 1
    %p83 = scmp.ne.s32.totalorder %s78, %s80
    %p84 = scmp.eq.s32.totalorder %s9, 0
    %p85 = por %p83, %p84
    %p86 = scmp.ne.s32.totalorder %s78, %s80
    %p87 = scmp.eq.s32.totalorder %s14, 1
    %p88 = por %p86, %p87
    %p89 = scmp.ne.s32.totalorder %s80, %s81
    %p90 = scmp.eq.s32.totalorder %s14, 0
    %p91 = por %p89, %p90
    %p92 = scmp.ne.s32.totalorder %s80, %s81
    %p93 = scmp.eq.s32.totalorder %s15, 1
    %p94 = por %p92, %p93
    %p96 = scmp.ne.s32.totalorder %s81, %s95
    %p97 = scmp.eq.s32.totalorder %s15, 0
    %p98 = por %p96, %p97
    %s99 = ssub.s32 %s16, %s28
    %s100 = ssub.s32 %s17, %s24
    %s101 = sor.u32 %s99, %s100
    %p102 = scmp.eq.s32.totalorder %s101, 0
    %s104 = sadd.s32 %s103, 1
    %s105 = scalar_select %p102, %s103, %s104
    %p108 = pneg %p102
    %p109 = scmp.eq.s32.totalorder %s9, 1
    %p110 = por %p108, %p109
    %p111 = scmp.ne.s32.totalorder %s103, %s106
    %p112 = scmp.eq.s32.totalorder %s9, 0
    %p113 = por %p111, %p112
    %p114 = scmp.ne.s32.totalorder %s103, %s106
    %p115 = scmp.eq.s32.totalorder %s14, 1
    %p116 = por %p114, %p115
    %p117 = scmp.ne.s32.totalorder %s106, %s107
    %p118 = scmp.eq.s32.totalorder %s14, 0
    %p119 = por %p117, %p118
    %p120 = scmp.ne.s32.totalorder %s106, %s107
    %p121 = scmp.eq.s32.totalorder %s15, 1
    %p122 = por %p120, %p121
    %p124 = scmp.ne.s32.totalorder %s107, %s123
    %p125 = scmp.eq.s32.totalorder %s15, 0
    %p126 = por %p124, %p125
    %p127 = scmp.le.s32.totalorder 1, %s9
    %p128 = scmp.lt.s32.totalorder %s9, 3
    %p129 = pnand %p127, %p128
    %p130 = pneg %p129
    // Predicated region
    $region9: #{geo_emb.1} parent=5 // pred_check
      _
    $region10: #{geo_emb.1} parent=5 // pred_check_branch
      %132 = sbr.rel (%p129) target = $region12
    $region11: #{geo_emb.1} parent=5 // pred_region
      %s133 = ssub.s32 %s9, 1
      // Predicated region
      $region13: #{geo_emb.1} parent=11 // pred_check
        %p134 = pneg %p70
      $region14: #{geo_emb.1} parent=11 // pred_check_branch
        %136 = sbr.rel (%p134) target = $region16
      $region15: #{geo_emb.1} parent=11 // pred_region
        _
      $region16: #{geo_emb.1} parent=11 // pred_fallthru
        _
      // Predicated region
      $region17: #{geo_emb.1} parent=11 // pred_check
        %p137 = pneg %p91
      $region18: #{geo_emb.1} parent=11 // pred_check_branch
        %139 = sbr.rel (%p137) target = $region20
      $region19: #{geo_emb.1} parent=11 // pred_region
        _
      $region20: #{geo_emb.1} parent=11 // pred_fallthru
        _
    $region12: #{geo_emb.1} parent=5 // pred_fallthru
      _
    %p140 = scmp.lt.s32.totalorder %s9, 2
    // Predicated region
    $region21: #{geo_emb.1} parent=5 // pred_check
      %p141 = pneg %p140
    $region22: #{geo_emb.1} parent=5 // pred_check_branch
      %143 = sbr.rel (%p141) target = $region24
    $region23: #{geo_emb.1} parent=5 // pred_region
      // Predicated region
      $region25: #{geo_emb.1} parent=23 // pred_check
        %p144 = pneg %p43
      $region26: #{geo_emb.1} parent=23 // pred_check_branch
        %146 = sbr.rel (%p144) target = $region28
      $region27: #{geo_emb.1} parent=23 // pred_region
        %s147 = smul.u32 2, %s17
        %p148 = scmp.lt.s32.totalorder %s16, 1
        %s149 = scalar_select %p148, %s16, 1
        %p150 = scmp.lt.s32.totalorder %s147, 1
        %s151 = scalar_select %p150, %s147, 1
        %s152 = smul.addr %s149, 2
        %s153 = sadd.s32 %s151, %s152
        %s154 = smul.addr %s153, 4
        %s155 = scalar_lea.vmem %s0, %s154
        %s156 = smul.u32 2, %s17
      $region28: #{geo_emb.1} parent=23 // pred_fallthru
        _
    $region24: #{geo_emb.1} parent=5 // pred_fallthru
      _
    %p157 = scmp.le.s32.totalorder 1, %s9
    %p158 = scmp.lt.s32.totalorder %s9, 3
    %p159 = pnand %p157, %p158
    %p160 = pneg %p159
    // Predicated region
    $region29: #{geo_emb.1} parent=5 // pred_check
      _
    $region30: #{geo_emb.1} parent=5 // pred_check_branch
      %162 = sbr.rel (%p159) target = $region32
    $region31: #{geo_emb.1} parent=5 // pred_region
      %s163 = ssub.s32 %s9, 1
      %s164 = smul.u32 2, %s19
      %p165 = scmp.lt.s32.totalorder %s18, 1
      %s166 = scalar_select %p165, %s18, 1
      %p167 = scmp.lt.s32.totalorder %s164, 1
      %s168 = scalar_select %p167, %s164, 1
      %s169 = smul.addr %s166, 2
      %s170 = sadd.s32 %s168, %s169
      %s171 = smul.addr %s170, 4
      %s172 = scalar_lea.vmem %s0, %s171
      %p173 = pneg %p49
      %p174 = pneg %p46
      %p175 = pneg %p70
      %p176 = pneg %p67
      %p177 = pneg %p91
      %p178 = pneg %p88
      %p179 = pneg %p119
      %p180 = pneg %p116
      %s181 = smul.u32 2, %s19
      %p182 = scmp.lt.s32.totalorder %s18, 1
      %s183 = scalar_select %p182, %s18, 1
      %p184 = scmp.lt.s32.totalorder %s181, 1
      %s185 = scalar_select %p184, %s181, 1
      %s186 = smul.addr %s183, 8
      %s187 = sadd.s32 %s185, %s186
      %s188 = smul.addr %s187, 8
      %s189 = scalar_lea.vmem %s3, %s188
      %s190 = smul.u32 2, %s19
      %p191 = scmp.lt.s32.totalorder %s18, 1
      %s192 = scalar_select %p191, %s18, 1
      %p193 = scmp.lt.s32.totalorder %s190, 1
      %s194 = scalar_select %p193, %s190, 1
      %s195 = smul.addr %s192, 2
      %s196 = sadd.s32 %s194, %s195
      %s197 = smul.addr %s196, 4
      %s198 = scalar_lea.vmem %s0, %s197
      %s199 = smul.u32 2, %s19
      %s200 = smul.u32 2, %s19
      %p201 = scmp.lt.s32.totalorder %s18, 1
      %s202 = scalar_select %p201, %s18, 1
      %p203 = scmp.lt.s32.totalorder %s200, 1
      %s204 = scalar_select %p203, %s200, 1
      %s205 = smul.addr %s202, 8
      %s206 = sadd.s32 %s204, %s205
      %s207 = smul.addr %s206, 8
      %s208 = scalar_lea.vmem %s3, %s207
      %s209 = smul.u32 2, %s19
      %v210 = vld [vmem:[%s198] sm:$0x77]
      %v211 = vld [vmem:[%s2] sm:$0xff]
      %v212 = vld [vmem:[%s2 + $0x8] sm:$0xff]
      %v213 = vld [vmem:[%s2 + $0x10] sm:$0xff]
      %v214 = vld [vmem:[%s2 + $0x18] sm:$0xff]
      %v215 = vld [vmem:[%s1] sm:$0xff]
      %v216 = vld [vmem:[%s1 + $0x8] sm:$0xff]
      %v217 = vld [vmem:[%s1 + $0x10] sm:$0xff]
      %v218 = vld [vmem:[%s1 + $0x18] sm:$0xff]
      %220 = vset.pattern.permute.xlu0 0
      %221 = vperm.xlu0 %220, %v215
      %v222 = vpop.permute.xlu0 %221
      %225 = vset.pattern.permute.xlu0 0
      %226 = vperm.xlu0 %225, %v216
      %v227 = vpop.permute.xlu0 %226
      %230 = vset.pattern.permute.xlu0 0
      %231 = vperm.xlu0 %230, %v217
      %v232 = vpop.permute.xlu0 %231
      %235 = vset.pattern.permute.xlu0 0
      %236 = vperm.xlu0 %235, %v218
      %v237 = vpop.permute.xlu0 %236
      %v240 = vlaneseq
      %v241 = vshrl.u32 %v240, 7
      %v242 = vsub.s32 0, %v241
      %v243 = vrot.slane %v210, %v242
      %v244 = vlaneseq
      %v245 = vshrl.u32 %v244, 7
      %v246 = vsub.s32 4, %v245
      %v247 = vrot.slane %v210, %v246
      %v250 = vlaneseq
      %v251 = vshrl.u32 %v250, 7
      %v252 = vsub.s32 0, %v251
      %v253 = vrot.slane %v243, %v252
      %v254 = vlaneseq
      %v255 = vshrl.u32 %v254, 7
      %v256 = vsub.s32 0, %v255
      %v257 = vrot.slane %v247, %v256
      %v258 = vmul.f32 %v222, %v253
      %v259 = vmul.f32 %v222, %v257
      %v260 = vmul.f32 %v227, %v253
      %v261 = vmul.f32 %v227, %v257
      %v262 = vmul.f32 %v232, %v253
      %v263 = vmul.f32 %v232, %v257
      %v264 = vmul.f32 %v237, %v253
      %v265 = vmul.f32 %v237, %v257
      %267 = vset.pattern.permute.xlu0 0
      %268 = vperm.xlu0 %267, %v211
      %v269 = vpop.permute.xlu0 %268
      %272 = vset.pattern.permute.xlu0 0
      %273 = vperm.xlu0 %272, %v212
      %v274 = vpop.permute.xlu0 %273
      %277 = vset.pattern.permute.xlu0 0
      %278 = vperm.xlu0 %277, %v213
      %v279 = vpop.permute.xlu0 %278
      %282 = vset.pattern.permute.xlu0 0
      %283 = vperm.xlu0 %282, %v214
      %v284 = vpop.permute.xlu0 %283
      %v286 = vadd.f32 %v269, %v258
      %v287 = vadd.f32 %v269, %v259
      %v288 = vadd.f32 %v274, %v260
      %v289 = vadd.f32 %v274, %v261
      %v290 = vadd.f32 %v279, %v262
      %v291 = vadd.f32 %v279, %v263
      %v292 = vadd.f32 %v284, %v264
      %v293 = vadd.f32 %v284, %v265
      %294 = vset.pattern.permute.xlu0 1
      %295 = vperm.xlu0 %294, %v215
      %v296 = vpop.permute.xlu0 %295
      %298 = vset.pattern.permute.xlu0 1
      %299 = vperm.xlu0 %298, %v216
      %v300 = vpop.permute.xlu0 %299
      %302 = vset.pattern.permute.xlu0 1
      %303 = vperm.xlu0 %302, %v217
      %v304 = vpop.permute.xlu0 %303
      %306 = vset.pattern.permute.xlu0 1
      %307 = vperm.xlu0 %306, %v218
      %v308 = vpop.permute.xlu0 %307
      %v310 = vlaneseq
      %v311 = vshrl.u32 %v310, 7
      %v312 = vsub.s32 1, %v311
      %v313 = vrot.slane %v210, %v312
      %v314 = vlaneseq
      %v315 = vshrl.u32 %v314, 7
      %v316 = vsub.s32 5, %v315
      %v317 = vrot.slane %v210, %v316
      %v320 = vlaneseq
      %v321 = vshrl.u32 %v320, 7
      %v322 = vsub.s32 1, %v321
      %v323 = vrot.slane %v313, %v322
      %v324 = vlaneseq
      %v325 = vshrl.u32 %v324, 7
      %v326 = vsub.s32 1, %v325
      %v327 = vrot.slane %v317, %v326
      %v328 = vmul.f32 %v296, %v323
      %v329 = vmul.f32 %v296, %v327
      %v330 = vmul.f32 %v300, %v323
      %v331 = vmul.f32 %v300, %v327
      %v332 = vmul.f32 %v304, %v323
      %v333 = vmul.f32 %v304, %v327
      %v334 = vmul.f32 %v308, %v323
      %v335 = vmul.f32 %v308, %v327
      %v336 = vadd.f32 %v286, %v328
      %v337 = vadd.f32 %v287, %v329
      %v338 = vadd.f32 %v288, %v330
      %v339 = vadd.f32 %v289, %v331
      %v340 = vadd.f32 %v290, %v332
      %v341 = vadd.f32 %v291, %v333
      %v342 = vadd.f32 %v292, %v334
      %v343 = vadd.f32 %v293, %v335
      %344 = vset.pattern.permute.xlu0 2
      %345 = vperm.xlu0 %344, %v215
      %v346 = vpop.permute.xlu0 %345
      %348 = vset.pattern.permute.xlu0 2
      %349 = vperm.xlu0 %348, %v216
      %v350 = vpop.permute.xlu0 %349
      %352 = vset.pattern.permute.xlu0 2
      %353 = vperm.xlu0 %352, %v217
      %v354 = vpop.permute.xlu0 %353
      %356 = vset.pattern.permute.xlu0 2
      %357 = vperm.xlu0 %356, %v218
      %v358 = vpop.permute.xlu0 %357
      %v360 = vlaneseq
      %v361 = vshrl.u32 %v360, 7
      %v362 = vsub.s32 2, %v361
      %v363 = vrot.slane %v210, %v362
      %v364 = vlaneseq
      %v365 = vshrl.u32 %v364, 7
      %v366 = vsub.s32 6, %v365
      %v367 = vrot.slane %v210, %v366
      %v370 = vlaneseq
      %v371 = vshrl.u32 %v370, 7
      %v372 = vsub.s32 2, %v371
      %v373 = vrot.slane %v363, %v372
      %v374 = vlaneseq
      %v375 = vshrl.u32 %v374, 7
      %v376 = vsub.s32 2, %v375
      %v377 = vrot.slane %v367, %v376
      %v378 = vmul.f32 %v346, %v373
      %v379 = vmul.f32 %v346, %v377
      %v380 = vmul.f32 %v350, %v373
      %v381 = vmul.f32 %v350, %v377
      %v382 = vmul.f32 %v354, %v373
      %v383 = vmul.f32 %v354, %v377
      %v384 = vmul.f32 %v358, %v373
      %v385 = vmul.f32 %v358, %v377
      %v386 = vadd.f32 %v336, %v378
      %v387 = vadd.f32 %v337, %v379
      %v388 = vadd.f32 %v338, %v380
      %v389 = vadd.f32 %v339, %v381
      %v390 = vadd.f32 %v340, %v382
      %v391 = vadd.f32 %v341, %v383
      %v392 = vadd.f32 %v342, %v384
      %v393 = vadd.f32 %v343, %v385
      %394 = vst [vmem:[%s208] sm:$0xff] %v386
      %395 = vst [vmem:[%s208 + $0x8] sm:$0xff] %v387
      %396 = vst [vmem:[%s208 + $0x10] sm:$0xff] %v388
      %397 = vst [vmem:[%s208 + $0x18] sm:$0xff] %v389
      %398 = vst [vmem:[%s208 + $0x20] sm:$0xff] %v390
      %399 = vst [vmem:[%s208 + $0x28] sm:$0xff] %v391
      %400 = vst [vmem:[%s208 + $0x30] sm:$0xff] %v392
      %401 = vst [vmem:[%s208 + $0x38] sm:$0xff] %v393
      %s402 = smul.u32 2, %s19
      %p403 = scmp.lt.s32.totalorder %s18, 1
      %s404 = scalar_select %p403, %s18, 1
      %p405 = scmp.lt.s32.totalorder %s402, 1
      %s406 = scalar_select %p405, %s402, 1
      %s407 = smul.addr %s404, 8
      %s408 = sadd.s32 %s406, %s407
      %s409 = smul.addr %s408, 8
      %s410 = scalar_lea.vmem %s3, %s409
      // Predicated region
      $region33: #{geo_emb.1} parent=31 // pred_check
        %p411 = pneg %p116
      $region34: #{geo_emb.1} parent=31 // pred_check_branch
        %413 = sbr.rel (%p411) target = $region36
      $region35: #{geo_emb.1} parent=31 // pred_region
        %s414 = smul.u32 2, %s19
      $region36: #{geo_emb.1} parent=31 // pred_fallthru
        _
    $region32: #{geo_emb.1} parent=5 // pred_fallthru
      _
    %p415 = scmp.le.s32.totalorder 2, %s9
    // Predicated region
    $region37: #{geo_emb.1} parent=5 // pred_check
      %p416 = pneg %p415
    $region38: #{geo_emb.1} parent=5 // pred_check_branch
      %418 = sbr.rel (%p416) target = $region40
    $region39: #{geo_emb.1} parent=5 // pred_region
      %s419 = ssub.s32 %s9, 2
      // Predicated region
      $region41: #{geo_emb.1} parent=39 // pred_check
        %p420 = pneg %p122
      $region42: #{geo_emb.1} parent=39 // pred_check_branch
        %422 = sbr.rel (%p420) target = $region44
      $region43: #{geo_emb.1} parent=39 // pred_region
        %s423 = smul.u32 2, %s21
        %p424 = scmp.lt.s32.totalorder %s20, 1
        %s425 = scalar_select %p424, %s20, 1
        %p426 = scmp.lt.s32.totalorder %s423, 1
        %s427 = scalar_select %p426, %s423, 1
        %s428 = smul.addr %s425, 8
        %s429 = sadd.s32 %s427, %s428
        %s430 = smul.addr %s429, 8
        %s431 = scalar_lea.vmem %s3, %s430
      $region44: #{geo_emb.1} parent=39 // pred_fallthru
        _
    $region40: #{geo_emb.1} parent=5 // pred_fallthru
      _
  $region6: #{geo_emb.1} parent=0 // loop_footer
    %s13 = sadd.s32 1, %s9
  $region7: #{geo_emb.1} parent=0 // loop_footer_branch
    %8 = sbr.rel target = $region3
  $region8: #{geo_emb.1} parent=0 // loop_exit
    _

</llo_original>
